<compile_context>
chip_gen: v7x
topology: tpu7x:2x2x1
jax: 0.10.0
libtpu: 0.0.40
codegen_flags: <defaults>
</compile_context>

<pallas_src>
import functools
import math

import jax
import jax.numpy as jnp
from jax.experimental import pallas as pl
from jax.experimental.pallas import tpu as pltpu

NUM_CLASSES = 8
EPS = 1e-7
_LOGP_MIN = math.log(EPS)        # == log(clip-min)
_LOGP_MAX = math.log1p(-EPS)     # == log(clip-max)


def _round_up(a, b):
    return (a + b - 1) // b * b


def _ce_kernel(x_ref, y_ref, out_ref, acc_ref, *, label_smooth, hw, block_l):
    """One (batch b, spatial-block j) step.

    x_ref:  (1, C, L) logits        (classes on sublanes, pixels on lanes)
    y_ref:  (1, 1, L) int32 labels
    out_ref:(1, 1, 128) per-batch partial sum (written in the epilogue)
    acc_ref:(C, L) f32 running per-element loss accumulator (VMEM scratch)
    """
    j = pl.program_id(1)

    @pl.when(j == 0)
    def _():
        acc_ref[...] = jnp.zeros_like(acc_ref)

    x = x_ref[0].astype(jnp.float32)          # (C, L)
    labels = y_ref[0]                         # (1, L) int32

    # log-softmax over the class (sublane) axis; clamp logp == clamp(p) then log.
    m = jnp.max(x, axis=0, keepdims=True)             # (1, L)
    z = x - m
    lse = jnp.log(jnp.sum(jnp.exp(z), axis=0, keepdims=True))
    logp = jnp.clip(z - lse, _LOGP_MIN, _LOGP_MAX)    # (C, L)

    # one-hot (optionally label-smoothed) built in-kernel.
    classes = jax.lax.broadcasted_iota(jnp.int32, x.shape, 0)   # (C, L)
    one_hot = (classes == labels).astype(jnp.float32)
    if label_smooth:
        one_hot = one_hot * (1.0 - label_smooth) + label_smooth / x.shape[0]

    contrib = -one_hot * logp                 # (C, L)

    # Mask out padded columns (only present when H*W is not a multiple of L).
    if hw % block_l != 0:
        col = j * block_l + jax.lax.broadcasted_iota(jnp.int32, (1, x.shape[1]), 1)
        contrib = contrib * (col < hw).astype(jnp.float32)

    # TODO(synk): class_weight / gamma focal-modulation paths (defaults None/0 in the module).
    acc_ref[...] += contrib                   # pure VPU in the steady state

    @pl.when(j == pl.num_programs(1) - 1)
    def _():
        total = jnp.sum(acc_ref[...])         # single reduce per batch block
        out_ref[...] = jnp.full(out_ref.shape, total, dtype=out_ref.dtype)


def cross_entropy_loss(x_tuple, y, *, label_smooth=0.0, target_lanes=32768):
    """Pallas implementation of CrossEntropyLoss.forward.

    x_tuple: tuple whose first element is (N, C=8, H, W) float logits.
    y:       (N, 1, H, W) integer class labels in [0, 8).
    Returns a float32 scalar loss.
    """
    x = x_tuple[0]
    n, c, h, w = x.shape
    assert c == NUM_CLASSES, "module hard-codes num_classes=8"
    hw = h * w

    # Native layout: classes on sublanes, flattened spatial on lanes (no transpose).
    x3 = x.reshape(n, c, hw)                       # keep input dtype (upcast in-kernel)
    y3 = y.reshape(n, 1, hw).astype(jnp.int32)     # lane-dense label stream

    block_l = min(int(target_lanes), _round_up(hw, 128))
    hw_pad = _round_up(hw, block_l)
    if hw_pad != hw:
        x3 = jnp.pad(x3, ((0, 0), (0, 0), (0, hw_pad - hw)))
        y3 = jnp.pad(y3, ((0, 0), (0, 0), (0, hw_pad - hw)))
    num_j = hw_pad // block_l

    kernel = functools.partial(
        _ce_kernel, label_smooth=float(label_smooth), hw=hw, block_l=block_l)

    partials = pl.pallas_call(
        kernel,
        out_shape=jax.ShapeDtypeStruct((n, 1, 128), jnp.float32),
        grid_spec=pltpu.PrefetchScalarGridSpec(
            num_scalar_prefetch=0,
            grid=(n, num_j),
            in_specs=[
                pl.BlockSpec((1, c, block_l), lambda b, j: (b, 0, j)),   # logits tile
                pl.BlockSpec((1, 1, block_l), lambda b, j: (b, 0, j)),   # label tile
            ],
            out_specs=pl.BlockSpec((1, 1, 128), lambda b, j: (b, 0, 0)),  # per-batch partial
            scratch_shapes=[pltpu.VMEM((c, block_l), jnp.float32)],
        ),
        compiler_params=pltpu.CompilerParams(
            dimension_semantics=("parallel", "arbitrary")),  # batch parallel (v7x 2 TC)
    )(x3, y3)

    # Combine per-batch partial sums on the host side; divide by true row count.
    return jnp.sum(partials[:, 0, 0]) / (n * hw)


def _reference(x_tuple, y, label_smooth=0.0):
    """Pure-JAX reference mirroring the PyTorch forward."""
    x = x_tuple[0]
    n, c, h, w = x.shape
    x2 = jnp.transpose(x, (0, 2, 3, 1)).reshape(-1, c).astype(jnp.float32)
    y2 = jnp.transpose(y, (0, 2, 3, 1)).reshape(-1)
    oh = jax.nn.one_hot(y2, c, dtype=jnp.float32)
    if label_smooth:
        oh = oh * (1.0 - label_smooth) + label_smooth / c
    p = jax.nn.softmax(x2, axis=1)
    p = jnp.clip(p, EPS, 1.0 - EPS)
    return jnp.mean(jnp.sum(-oh * jnp.log(p), axis=-1))


if __name__ == "__main__":
    key = jax.random.PRNGKey(0)
    kx, ky = jax.random.split(key)

    # Case 1: default (no smoothing), lane-aligned spatial extent.
    n, c, h, w = 2, NUM_CLASSES, 16, 16            # H*W = 256
    x = jax.random.normal(kx, (n, c, h, w), dtype=jnp.float32)
    y = jax.random.randint(ky, (n, 1, h, w), 0, NUM_CLASSES, dtype=jnp.int32)

    loss = jax.block_until_ready(cross_entropy_loss((x,), y))
    ref = _reference((x,), y)
    assert jnp.allclose(loss, ref, rtol=1e-5, atol=1e-5), (loss, ref)

    # Case 2: label smoothing + H*W not a multiple of 128 (exercises padded-tail mask).
    h2, w2 = 9, 10                                  # H*W = 90
    x2 = jax.random.normal(kx, (n, c, h2, w2), dtype=jnp.float32)
    y2 = jax.random.randint(ky, (n, 1, h2, w2), 0, NUM_CLASSES, dtype=jnp.int32)

    loss2 = jax.block_until_ready(cross_entropy_loss((x2,), y2, label_smooth=0.1))
    ref2 = _reference((x2,), y2, label_smooth=0.1)
    assert jnp.allclose(loss2, ref2, rtol=1e-5, atol=1e-5), (loss2, ref2)

    print("KERNEL_OK")
</pallas_src>

<mosaic_0001>
module attributes {stable_mosaic.version = 11 : i64} {
  func.func @_ce_kernel(%arg0: i32, %arg1: i32, %arg2: memref<1x8x256xf32, #tpu.memory_space<vmem>>, %arg3: memref<1x1x256xi32, #tpu.memory_space<vmem>>, %arg4: memref<1x1x128xf32, #tpu.memory_space<vmem>>, %arg5: memref<8x256xf32, #tpu.memory_space<vmem>>) attributes {dimension_semantics = [#tpu.dimension_semantics<parallel>, #tpu.dimension_semantics<arbitrary>], iteration_bounds = array<i64: 2, 1>, scalar_prefetch = 0 : i64, scratch_operands = 1 : i64, tpu.core_type = #tpu.core_type<tc>, window_params = [{transform_indices = @transform_0, window_bounds = array<i64: 1, 8, 256>}, {transform_indices = @transform_1, window_bounds = array<i64: 1, 1, 256>}, {transform_indices = @transform_2, window_bounds = array<i64: 1, 1, 128>}]} {
    %c0_i32 = arith.constant 0 : i32
    %0 = arith.cmpi eq, %arg1, %c0_i32 : i32
    %1 = arith.extui %0 : i1 to i32
    %c0_i32_0 = arith.constant 0 : i32
    %2 = arith.cmpi ne, %1, %c0_i32_0 : i32
    scf.if %2 {
      %cst_16 = arith.constant 0.000000e+00 : f32
      %35 = vector.broadcast %cst_16 : f32 to vector<8x256xf32>
      %c0_17 = arith.constant 0 : index
      %c0_18 = arith.constant 0 : index
      %36 = vector.load %arg5[%c0_17, %c0_18] : memref<8x256xf32, #tpu.memory_space<vmem>>, vector<8x256xf32>
      tpu.vector_store %arg5[%c0_17, %c0_18], %35 {strides = array<i32>} : memref<8x256xf32, #tpu.memory_space<vmem>>, vector<8x256xf32>,
    } else {
    }
    %c0 = arith.constant 0 : index
    %c0_1 = arith.constant 0 : index
    %c0_2 = arith.constant 0 : index
    %3 = vector.load %arg2[%c0, %c0_1, %c0_2] : memref<1x8x256xf32, #tpu.memory_space<vmem>>, vector<1x8x256xf32>
    %4 = vector.shape_cast %3 : vector<1x8x256xf32> to vector<8x256xf32>
    %c0_3 = arith.constant 0 : index
    %c0_4 = arith.constant 0 : index
    %c0_5 = arith.constant 0 : index
    %5 = vector.load %arg3[%c0_3, %c0_4, %c0_5] : memref<1x1x256xi32, #tpu.memory_space<vmem>>, vector<1x1x256xi32>
    %6 = vector.shape_cast %5 : vector<1x1x256xi32> to vector<1x256xi32>
    %cst = arith.constant dense<0xFF800000> : vector<256xf32>
    %7 = vector.multi_reduction <maximumf>, %4, %cst [0] : vector<8x256xf32> to vector<256xf32>
    %8 = vector.shape_cast %7 : vector<256xf32> to vector<1x256xf32>
    %9 = vector.broadcast %8 : vector<1x256xf32> to vector<8x256xf32>
    %10 = arith.subf %4, %9 : vector<8x256xf32>
    %11 = math.exp %10 : vector<8x256xf32>
    %cst_6 = arith.constant dense<0.000000e+00> : vector<256xf32>
    %12 = vector.multi_reduction <add>, %11, %cst_6 [0] : vector<8x256xf32> to vector<256xf32>
    %13 = vector.shape_cast %12 : vector<256xf32> to vector<1x256xf32>
    %14 = math.log %13 : vector<1x256xf32>
    %15 = vector.broadcast %14 : vector<1x256xf32> to vector<8x256xf32>
    %16 = arith.subf %10, %15 : vector<8x256xf32>
    %cst_7 = arith.constant -16.1180954 : f32
    %cst_8 = arith.constant -1.00000008E-7 : f32
    %17 = vector.broadcast %cst_7 : f32 to vector<8x256xf32>
    %18 = arith.maximumf %17, %16 : vector<8x256xf32>
    %19 = vector.broadcast %cst_8 : f32 to vector<8x256xf32>
    %20 = arith.minimumf %19, %18 : vector<8x256xf32>
    %21 = tpu.iota {dimensions = array<i32: 0>} : vector<8x256xi32>
    %22 = vector.broadcast %6 : vector<1x256xi32> to vector<8x256xi32>
    %23 = arith.cmpi eq, %21, %22 : vector<8x256xi32>
    %24 = arith.extui %23 : vector<8x256xi1> to vector<8x256xi32>
    %25 = arith.sitofp %24 : vector<8x256xi32> to vector<8x256xf32>
    %cst_9 = arith.constant 0.000000e+00 : f32
    %26 = vector.broadcast %cst_9 : f32 to vector<8x256xf32>
    %27 = arith.subf %26, %25 : vector<8x256xf32>
    %28 = arith.mulf %27, %20 : vector<8x256xf32>
    %c0_10 = arith.constant 0 : index
    %c0_11 = arith.constant 0 : index
    %29 = vector.load %arg5[%c0_10, %c0_11] : memref<8x256xf32, #tpu.memory_space<vmem>>, vector<8x256xf32>
    %30 = arith.addf %29, %28 : vector<8x256xf32>
    %c0_12 = arith.constant 0 : index
    %c0_13 = arith.constant 0 : index
    %31 = vector.load %arg5[%c0_12, %c0_13] : memref<8x256xf32, #tpu.memory_space<vmem>>, vector<8x256xf32>
    tpu.vector_store %arg5[%c0_12, %c0_13], %30 {strides = array<i32>} : memref<8x256xf32, #tpu.memory_space<vmem>>, vector<8x256xf32>,
    %c0_i32_14 = arith.constant 0 : i32
    %32 = arith.cmpi eq, %arg1, %c0_i32_14 : i32
    %33 = arith.extui %32 : i1 to i32
    %c0_i32_15 = arith.constant 0 : i32
    %34 = arith.cmpi ne, %33, %c0_i32_15 : i32
    scf.if %34 {
      %c0_16 = arith.constant 0 : index
      %c0_17 = arith.constant 0 : index
      %35 = vector.load %arg5[%c0_16, %c0_17] : memref<8x256xf32, #tpu.memory_space<vmem>>, vector<8x256xf32>
      %36 = vector.shape_cast %35 : vector<8x256xf32> to vector<1x8x256xf32>
      %cst_18 = arith.constant dense<0.000000e+00> : vector<1xf32>
      %37 = vector.multi_reduction <add>, %36, %cst_18 [1, 2] : vector<1x8x256xf32> to vector<1xf32>
      %38 = vector.shape_cast %37 : vector<1xf32> to vector<1x1x1xf32>
      %39 = vector.extract %38[0, 0, 0] : f32 from vector<1x1x1xf32>
      %40 = vector.broadcast %39 : f32 to vector<1x1x128xf32>
      %c0_19 = arith.constant 0 : index
      %c0_20 = arith.constant 0 : index
      %c0_21 = arith.constant 0 : index
      %41 = vector.load %arg4[%c0_19, %c0_20, %c0_21] : memref<1x1x128xf32, #tpu.memory_space<vmem>>, vector<1x1x128xf32>
      tpu.vector_store %arg4[%c0_19, %c0_20, %c0_21], %40 {strides = array<i32>} : memref<1x1x128xf32, #tpu.memory_space<vmem>>, vector<1x1x128xf32>,
    } else {
    }
    return
  }
  func.func @transform_0(%arg0: i32, %arg1: i32) -> (i32, i32, i32) {
    %c0_i32 = arith.constant 0 : i32
    %c0_i32_0 = arith.constant 0 : i32
    return %arg0, %c0_i32, %arg1 : i32, i32, i32
  }
  func.func @transform_1(%arg0: i32, %arg1: i32) -> (i32, i32, i32) {
    %c0_i32 = arith.constant 0 : i32
    %c0_i32_0 = arith.constant 0 : i32
    return %arg0, %c0_i32, %arg1 : i32, i32, i32
  }
  func.func @transform_2(%arg0: i32, %arg1: i32) -> (i32, i32, i32) {
    %c0_i32 = arith.constant 0 : i32
    %c0_i32_0 = arith.constant 0 : i32
    %c0_i32_1 = arith.constant 0 : i32
    return %arg0, %c0_i32, %c0_i32_0 : i32, i32, i32
  }
}

</mosaic_0001>

<llo_original>
// kernel: tpu_custom_call.1
$region0: #{tpu_custom_call.1}
  #allocation0 [shape = 'u32[]', space=smem, size = 0x4, offset = 0x4, fixed_abs, tag = 'smem constant byte address 0x4 - core index']
  #allocation1 [shape = 'u32[144,128]{1,0:T(1,128)}', space=vmem, size = 0x12000, scoped, tag = 'internal scratch']
  #allocation2 [shape = 'f32[8,256]{1,0:T(8,128)}', space=vmem, size = 0x2000, scoped, tag = 'scratch operand']
  %s0 = inlined_call_operand.hbm [shape: f32[2,8,256], index: 0, kind: input, shape index: {}]
  %s1 = inlined_call_operand.hbm [shape: s32[2,1,256], index: 1, kind: input, shape index: {}]
  %s2 = inlined_call_operand.hbm [shape: f32[2,1,128], index: 2, kind: output, shape index: {}]
  %s3 = sld [smem:[#allocation0]]
  $region57: #{tpu_custom_call.1} parent=0
    _
  %s5 = ssub.s32 1, %s3
  %s6 = scalar_select 0, %s5, %s3
  $region1: #{tpu_custom_call.1} parent=0
    #allocation3 [shape = 'u8[16384]{0}', space=vmem, size = 0x4000, scoped, tag = 'input window, operand 0']
    #allocation4 [shape = 's32[2]{0}', space=sflag, size = 0x8, scoped, tag = 'scoped memory for tpu_custom_call.1']
    #allocation5 [shape = 's32[2]{0}', space=sflag, size = 0x8, scoped, tag = 'scoped memory for tpu_custom_call.1']
    #allocation6 [shape = 'u8[2048]{0}', space=vmem, size = 0x800, scoped, tag = 'input window, operand 1']
    #allocation7 [shape = 's32[2]{0}', space=sflag, size = 0x8, scoped, tag = 'scoped memory for tpu_custom_call.1']
    #allocation8 [shape = 'u8[1024]{0}', space=vmem, size = 0x400, scoped, tag = 'output window, operand 0']
    %7 = vsyncpa [#allocation4], 0
    %s8 = scalar_lea.sflag [#allocation4], 1
    %9 = vsyncpa %s8, 0
    %10 = vsyncpa [#allocation7], 0
    %s11 = scalar_lea.sflag [#allocation7], 1
    %12 = vsyncpa %s11, 0
    %13 = vsyncpa [#allocation5], 0
    %s14 = scalar_lea.sflag [#allocation5], 1
    %15 = vsyncpa %s14, 0
    loop: start=0, step=1, limit=4
    $region2: #{tpu_custom_call.1} parent=1 // loop_pre_header
      _
    $region3: #{tpu_custom_call.1} parent=1 // loop_header
      %s17 = sphi 0, %s21
      %p18 = scmp.ge.s32.totalorder %s17, 4
      %s24 = sphi 0, %s36
      %s25 = sphi 0, %s32
      %s26 = sphi 0, %s24
      %s27 = sphi 0, %s25
      %s28 = sphi 0, %s26
      %s29 = sphi 0, %s27
      %s41 = sphi 0, %s43
      %s44 = sphi 0, %s41
      %s45 = sphi 0, %s44
      %s61 = sphi 0, %s45
      %s69 = sphi 0, %s71
      %s72 = sphi 0, %s69
      %s73 = sphi 0, %s72
      %s89 = sphi 0, %s73
      %s95 = sphi 0, %s97
      %s98 = sphi 0, %s95
      %s99 = sphi 0, %s98
      %s115 = sphi 0, %s99
    $region4: #{tpu_custom_call.1} parent=1 // loop_header_branch
      %20 = sbr.rel (%p18) target = $region8
    $region5: #{tpu_custom_call.1} parent=1 // loop_body
      %s22 = ssub.s32 %s17, 1
      %s23 = ssub.s32 %s17, 2
      %s30 = sadd.s32 1, %s25
      %p31 = scmp.ge.s32.totalorder %s30, 1
      %s32 = scalar_select %p31, 0, %s30
      %s33 = sadd.s32 1, %s24
      %s34 = scalar_select %p31, %s33, %s24
      %p35 = scmp.ge.s32.totalorder %s34, 2
      %s36 = scalar_select %p35, 0, %s34
      %s37 = ssub.s32 %s24, %s36
      %s38 = ssub.s32 %s25, %s32
      %s39 = sor.u32 %s37, %s38
      %p40 = scmp.eq.s32.totalorder %s39, 0
      %s42 = sadd.s32 %s41, 1
      %s43 = scalar_select %p40, %s41, %s42
      %p46 = pneg %p40
      %p47 = scmp.eq.s32.totalorder %s17, 1
      %p48 = por %p46, %p47
      %p49 = scmp.ne.s32.totalorder %s41, %s44
      %p50 = scmp.eq.s32.totalorder %s17, 0
      %p51 = por %p49, %p50
      %p52 = scmp.ne.s32.totalorder %s41, %s44
      %p53 = scmp.eq.s32.totalorder %s22, 1
      %p54 = por %p52, %p53
      %p55 = scmp.ne.s32.totalorder %s44, %s45
      %p56 = scmp.eq.s32.totalorder %s22, 0
      %p57 = por %p55, %p56
      %p58 = scmp.ne.s32.totalorder %s44, %s45
      %p59 = scmp.eq.s32.totalorder %s23, 1
      %p60 = por %p58, %p59
      %p62 = scmp.ne.s32.totalorder %s45, %s61
      %p63 = scmp.eq.s32.totalorder %s23, 0
      %p64 = por %p62, %p63
      %s65 = ssub.s32 %s24, %s36
      %s66 = ssub.s32 %s25, %s32
      %s67 = sor.u32 %s65, %s66
      %p68 = scmp.eq.s32.totalorder %s67, 0
      %s70 = sadd.s32 %s69, 1
      %s71 = scalar_select %p68, %s69, %s70
      %p74 = pneg %p68
      %p75 = scmp.eq.s32.totalorder %s17, 1
      %p76 = por %p74, %p75
      %p77 = scmp.ne.s32.totalorder %s69, %s72
      %p78 = scmp.eq.s32.totalorder %s17, 0
      %p79 = por %p77, %p78
      %p80 = scmp.ne.s32.totalorder %s69, %s72
      %p81 = scmp.eq.s32.totalorder %s22, 1
      %p82 = por %p80, %p81
      %p83 = scmp.ne.s32.totalorder %s72, %s73
      %p84 = scmp.eq.s32.totalorder %s22, 0
      %p85 = por %p83, %p84
      %p86 = scmp.ne.s32.totalorder %s72, %s73
      %p87 = scmp.eq.s32.totalorder %s23, 1
      %p88 = por %p86, %p87
      %p90 = scmp.ne.s32.totalorder %s73, %s89
      %p91 = scmp.eq.s32.totalorder %s23, 0
      %p92 = por %p90, %p91
      %s93 = ssub.s32 %s24, %s36
      %p94 = scmp.eq.s32.totalorder %s93, 0
      %s96 = sadd.s32 %s95, 1
      %s97 = scalar_select %p94, %s95, %s96
      %p100 = pneg %p94
      %p101 = scmp.eq.s32.totalorder %s17, 1
      %p102 = por %p100, %p101
      %p103 = scmp.ne.s32.totalorder %s95, %s98
      %p104 = scmp.eq.s32.totalorder %s17, 0
      %p105 = por %p103, %p104
      %p106 = scmp.ne.s32.totalorder %s95, %s98
      %p107 = scmp.eq.s32.totalorder %s22, 1
      %p108 = por %p106, %p107
      %p109 = scmp.ne.s32.totalorder %s98, %s99
      %p110 = scmp.eq.s32.totalorder %s22, 0
      %p111 = por %p109, %p110
      %p112 = scmp.ne.s32.totalorder %s98, %s99
      %p113 = scmp.eq.s32.totalorder %s23, 1
      %p114 = por %p112, %p113
      %p116 = scmp.ne.s32.totalorder %s99, %s115
      %p117 = scmp.eq.s32.totalorder %s23, 0
      %p118 = por %p116, %p117
      %p119 = scmp.le.s32.totalorder 1, %s17
      %p120 = scmp.lt.s32.totalorder %s17, 3
      %p121 = pnand %p119, %p120
      %p122 = pneg %p121
      // Predicated region
      $region9: #{tpu_custom_call.1} parent=5 // pred_check
        _
      $region10: #{tpu_custom_call.1} parent=5 // pred_check_branch
        %124 = sbr.rel (%p121) target = $region12
      $region11: #{tpu_custom_call.1} parent=5 // pred_region
        %s125 = ssub.s32 %s17, 1
      $region12: #{tpu_custom_call.1} parent=5 // pred_fallthru
        _
      %p126 = scmp.lt.s32.totalorder %s17, 2
      // Predicated region
      $region13: #{tpu_custom_call.1} parent=5 // pred_check
        %p127 = pneg %p126
      $region14: #{tpu_custom_call.1} parent=5 // pred_check_branch
        %129 = sbr.rel (%p127) target = $region16
      $region15: #{tpu_custom_call.1} parent=5 // pred_region
        // Predicated region
        $region17: #{tpu_custom_call.1} parent=15 // pred_check
          %p130 = pneg %p51
        $region18: #{tpu_custom_call.1} parent=15 // pred_check_branch
          %132 = sbr.rel (%p130) target = $region20
        $region19: #{tpu_custom_call.1} parent=15 // pred_region
          %s133 = sand.u32 %s41, 1
          %s134 = scalar_lea.sflag [#allocation4], %s133
          %s135 = sand.u32 %s41, 1
          %s136 = smul.addr %s135, 16
          %s137 = scalar_lea.vmem [#allocation3], %s136
          %s138 = smul.u32 2, %s25
          %s140 = ssub.s32 256, 256
          %141 = vsyncadd %s134, %s140
          %s142 = smul.addr %s24, 2
          %s143 = sadd.s32 %s138, %s142
          %s144 = smul.addr %s143, 128
          %s145 = scalar_lea.hbm %s0, %s144
          %s147 = sshll.u32 %s137, 4
          %s148 = int_to_ptr.vmem [resolvable:$true] %s147
          %150 = dma.hbm_to_vmem [thread:$0]  %s145, 256, %s148, %s134
        $region20: #{tpu_custom_call.1} parent=15 // pred_fallthru
          _
        // Predicated region
        $region21: #{tpu_custom_call.1} parent=15 // pred_check
          %p151 = pneg %p79
        $region22: #{tpu_custom_call.1} parent=15 // pred_check_branch
          %153 = sbr.rel (%p151) target = $region24
        $region23: #{tpu_custom_call.1} parent=15 // pred_region
          %s154 = sand.u32 %s69, 1
          %s155 = scalar_lea.sflag [#allocation7], %s154
          %s156 = sand.u32 %s69, 1
          %s157 = smul.addr %s156, 2
          %s158 = scalar_lea.vmem [#allocation6], %s157
          %s159 = smul.u32 2, %s25
          %s161 = ssub.s32 32, 32
          %162 = vsyncadd %s155, %s161
          %s163 = smul.addr %s24, 2
          %s164 = sadd.s32 %s159, %s163
          %s165 = smul.addr %s164, 16
          %s166 = scalar_lea.hbm %s1, %s165
          %s168 = sshll.u32 %s158, 4
          %s169 = int_to_ptr.vmem [resolvable:$true] %s168
          %171 = dma.hbm_to_vmem [thread:$0]  %s166, 32, %s169, %s155
        $region24: #{tpu_custom_call.1} parent=15 // pred_fallthru
          _
      $region16: #{tpu_custom_call.1} parent=5 // pred_fallthru
        _
      %p172 = scmp.le.s32.totalorder 1, %s17
      %p173 = scmp.lt.s32.totalorder %s17, 3
      %p174 = pnand %p172, %p173
      %p175 = pneg %p174
      // Predicated region
      $region25: #{tpu_custom_call.1} parent=5 // pred_check
        _
      $region26: #{tpu_custom_call.1} parent=5 // pred_check_branch
        %177 = sbr.rel (%p174) target = $region28
      $region27: #{tpu_custom_call.1} parent=5 // pred_region
        %s178 = ssub.s32 %s17, 1
        %s179 = sand.u32 %s44, 1
        %s180 = scalar_lea.sflag [#allocation4], %s179
        %s181 = sand.u32 %s44, 1
        %s182 = smul.addr %s181, 16
        %s183 = scalar_lea.vmem [#allocation3], %s182
        // Predicated region
        $region29: #{tpu_custom_call.1} parent=27 // pred_check
          %p184 = pneg %p57
        $region30: #{tpu_custom_call.1} parent=27 // pred_check_branch
          %186 = sbr.rel (%p184) target = $region32
        $region31: #{tpu_custom_call.1} parent=27 // pred_region
          %187 = dma.done %s180, 256
        $region32: #{tpu_custom_call.1} parent=27 // pred_fallthru
          _
        %s188 = sand.u32 %s72, 1
        %s189 = scalar_lea.sflag [#allocation7], %s188
        %s190 = sand.u32 %s72, 1
        %s191 = smul.addr %s190, 2
        %s192 = scalar_lea.vmem [#allocation6], %s191
        // Predicated region
        $region33: #{tpu_custom_call.1} parent=27 // pred_check
          %p193 = pneg %p85
        $region34: #{tpu_custom_call.1} parent=27 // pred_check_branch
          %195 = sbr.rel (%p193) target = $region36
        $region35: #{tpu_custom_call.1} parent=27 // pred_region
          %196 = dma.done %s189, 32
        $region36: #{tpu_custom_call.1} parent=27 // pred_fallthru
          _
        %s197 = sand.u32 %s44, 1
        %s198 = scalar_lea.sflag [#allocation4], %s197
        %s199 = sand.u32 %s44, 1
        %s200 = smul.addr %s199, 16
        %s201 = scalar_lea.vmem [#allocation3], %s200
        %p202 = pneg %p57
        %p203 = pneg %p54
        %s204 = sand.u32 %s72, 1
        %s205 = scalar_lea.sflag [#allocation7], %s204
        %s206 = sand.u32 %s72, 1
        %s207 = smul.addr %s206, 2
        %s208 = scalar_lea.vmem [#allocation6], %s207
        %p209 = pneg %p85
        %p210 = pneg %p82
        %p211 = pneg %p111
        %p212 = pneg %p108
        %s213 = sand.u32 %s98, 1
        %s214 = scalar_lea.sflag [#allocation5], %s213
        %s215 = sand.u32 %s98, 1
        %s216 = scalar_lea.vmem [#allocation8], %s215
        %s217 = smul.u32 2, %s27
        %s218 = smul.u32 2, %s27
        %p219 = scmp.eq.s32.totalorder %s27, 0
        // Predicated region
        $region37: #{tpu_custom_call.1} parent=27 // pred_check
          %p220 = pneg %p219
        $region38: #{tpu_custom_call.1} parent=27 // pred_check_branch
          %222 = sbr.rel (%p220) target = $region40
        $region39: #{tpu_custom_call.1} parent=27 // pred_region
          %223 = vst [vmem:[#allocation2] sm:$0xff] 0.0
          %224 = vst [vmem:[#allocation2 + $0x8] sm:$0xff] 0.0
        $region40: #{tpu_custom_call.1} parent=27 // pred_fallthru
          _
        %v225 = vld [vmem:[%s183] sm:$0xff]
        %v226 = vld [vmem:[%s183 + $0x8] sm:$0xff]
        %v227 = vld [vmem:[%s192] sm:$0x3]
        %v228 = vrot.slane %v225, 4
        %v229 = vmax.f32 %v225, %v228
        %v230 = vrot.slane %v229, 2
        %v231 = vmax.f32 %v229, %v230
        %v232 = vrot.slane %v231, 1
        %v233 = vmax.f32 %v231, %v232
        %v234 = vrot.slane %v226, 4
        %v235 = vmax.f32 %v226, %v234
        %v236 = vrot.slane %v235, 2
        %v237 = vmax.f32 %v235, %v236
        %v238 = vrot.slane %v237, 1
        %v239 = vmax.f32 %v237, %v238
        %v240 = vsub.f32 %v225, %v233
        %v241 = vsub.f32 %v226, %v239
        %v242 = vmul.f32 %v240, 1.442695
        %v243 = vpow.pop %v242
        %v244 = vmul.f32 %v241, 1.442695
        %v245 = vpow.pop %v244
        %v246 = vrot.slane %v243, 4
        %v247 = vadd.f32 %v243, %v246
        %v248 = vrot.slane %v247, 2
        %v249 = vadd.f32 %v247, %v248
        %v250 = vrot.slane %v249, 1
        %v251 = vadd.f32 %v249, %v250
        %v252 = vrot.slane %v245, 4
        %v253 = vadd.f32 %v245, %v252
        %v254 = vrot.slane %v253, 2
        %v255 = vadd.f32 %v253, %v254
        %v256 = vrot.slane %v255, 1
        %v257 = vadd.f32 %v255, %v256
        %v258 = vlog2.pop %v251
        %v259 = vmul.f32 %v258, 0.6931472
        %v260 = vlog2.pop %v257
        %v261 = vmul.f32 %v260, 0.6931472
        %v262 = vsub.f32 %v240, %v259
        %v263 = vsub.f32 %v241, %v261
        %v264 = vmax.f32 %v262, -16.118095
        %v265 = vmax.f32 %v263, -16.118095
        %v266 = vmin.f32 %v264, -1.0000001e-07
        %v267 = vmin.f32 %v265, -1.0000001e-07
        %v268 = vlaneseq
        %v269 = vshrl.u32 %v268, 7
        %v270 = vlaneseq
        %v271 = vshrl.u32 %v270, 7
        %v272 = vsub.s32 0, %v271
        %v273 = vrot.slane %v227, %v272
        %v274 = vlaneseq
        %v275 = vshrl.u32 %v274, 7
        %v276 = vsub.s32 1, %v275
        %v277 = vrot.slane %v227, %v276
        %vm278 = vcmp.eq.s32.totalorder %v269, %v273
        %vm279 = vcmp.eq.s32.totalorder %v269, %v277
        %v280 = vsel %vm278, 1, 0
        %v281 = vsel %vm279, 1, 0
        %v282 = vcvt.s32.f32 %v280
        %v283 = vcvt.s32.f32 %v281
        %v284 = vsub.f32 0.0, %v282
        %v285 = vsub.f32 0.0, %v283
        %v286 = vmul.f32 %v284, %v266
        %v287 = vmul.f32 %v285, %v267
        %v288 = vld [vmem:[#allocation2] sm:$0xff]
        %v289 = vld [vmem:[#allocation2 + $0x8] sm:$0xff]
        %v290 = vadd.f32 %v288, %v286
        %v291 = vadd.f32 %v289, %v287
        %292 = vst [vmem:[#allocation2] sm:$0xff] %v290
        %293 = vst [vmem:[#allocation2 + $0x8] sm:$0xff] %v291
        // Predicated region
        $region41: #{tpu_custom_call.1} parent=27 // pred_check
          %p294 = pneg %p219
        $region42: #{tpu_custom_call.1} parent=27 // pred_check_branch
          %296 = sbr.rel (%p294) target = $region44
        $region43: #{tpu_custom_call.1} parent=27 // pred_region
          %v297 = vld [vmem:[#allocation2] sm:$0xff]
          %v298 = vld [vmem:[#allocation2 + $0x8] sm:$0xff]
          %v299 = vadd.f32 %v297, %v298
          %300 = vadd.xlane.f32.xlu0 %v299
          %v301 = vpop.xlane.xlu0 %300
          %v302 = vrot.slane %v301, 4
          %v303 = vadd.f32 %v301, %v302
          %v304 = vrot.slane %v303, 2
          %v305 = vadd.f32 %v303, %v304
          %v306 = vrot.slane %v305, 1
          %v307 = vadd.f32 %v305, %v306
          %s308 = vtos %v307
          %v309 = vstv %s308
          %310 = vst [vmem:[%s216] sm:$0x1] %v309
        $region44: #{tpu_custom_call.1} parent=27 // pred_fallthru
          _
        %s311 = sand.u32 %s98, 1
        %s312 = scalar_lea.sflag [#allocation5], %s311
        %s313 = sand.u32 %s98, 1
        %s314 = scalar_lea.vmem [#allocation8], %s313
        // Predicated region
        $region45: #{tpu_custom_call.1} parent=27 // pred_check
          %p315 = pneg %p108
        $region46: #{tpu_custom_call.1} parent=27 // pred_check_branch
          %317 = sbr.rel (%p315) target = $region48
        $region47: #{tpu_custom_call.1} parent=27 // pred_region
          %s319 = ssub.s32 16, 16
          %320 = vsyncadd %s312, %s319
          %s321 = smul.addr %s26, 16
          %s322 = scalar_lea.hbm %s2, %s321
          %s324 = sshll.u32 %s314, 4
          %s325 = int_to_ptr.vmem [resolvable:$true] %s324
          %327 = dma.vmem_to_hbm [thread:$0]  %s325, 16, %s322, %s312
        $region48: #{tpu_custom_call.1} parent=27 // pred_fallthru
          _
      $region28: #{tpu_custom_call.1} parent=5 // pred_fallthru
        _
      %p328 = scmp.le.s32.totalorder 2, %s17
      // Predicated region
      $region49: #{tpu_custom_call.1} parent=5 // pred_check
        %p329 = pneg %p328
      $region50: #{tpu_custom_call.1} parent=5 // pred_check_branch
        %331 = sbr.rel (%p329) target = $region52
      $region51: #{tpu_custom_call.1} parent=5 // pred_region
        %s332 = ssub.s32 %s17, 2
        // Predicated region
        $region53: #{tpu_custom_call.1} parent=51 // pred_check
          %p333 = pneg %p114
        $region54: #{tpu_custom_call.1} parent=51 // pred_check_branch
          %335 = sbr.rel (%p333) target = $region56
        $region55: #{tpu_custom_call.1} parent=51 // pred_region
          %s336 = sand.u32 %s99, 1
          %s337 = scalar_lea.sflag [#allocation5], %s336
          %s338 = sand.u32 %s99, 1
          %s339 = scalar_lea.vmem [#allocation8], %s338
          %340 = dma.done %s337, 16
        $region56: #{tpu_custom_call.1} parent=51 // pred_fallthru
          _
      $region52: #{tpu_custom_call.1} parent=5 // pred_fallthru
        _
    $region6: #{tpu_custom_call.1} parent=1 // loop_footer
      %s21 = sadd.s32 1, %s17
    $region7: #{tpu_custom_call.1} parent=1 // loop_footer_branch
      %16 = sbr.rel target = $region3
    $region8: #{tpu_custom_call.1} parent=1 // loop_exit
      _
    %341 = vsyncpa [#allocation4], 1
    %s342 = scalar_lea.sflag [#allocation4], 1
    %343 = vsyncpa %s342, 1
    %344 = vsyncpa [#allocation7], 1
    %s345 = scalar_lea.sflag [#allocation7], 1
    %346 = vsyncpa %s345, 1
    %347 = vsyncpa [#allocation5], 1
    %s348 = scalar_lea.sflag [#allocation5], 1
    %349 = vsyncpa %s348, 1

</llo_original>
